<compile_context>
chip_gen: v7x
topology: tpu7x:2x2x1
jax: 0.10.0
libtpu: 0.0.40
codegen_flags: <defaults>
</compile_context>

<pallas_src>
import jax
import jax.numpy as jnp
from jax import lax
from jax.experimental import pallas as pl
from jax.experimental.pallas import tpu as pltpu

_LANE = 128
_SUBLANE = 8


def _round_up(x, m):
    return ((x + m - 1) // m) * m


def _vmem_capacity_bytes():
    """Physical per-core VMEM; conservative (v7x-sized) default if unavailable."""
    try:
        info = pltpu.get_tpu_info()
        cap = int(getattr(info, "vmem_capacity_bytes", 0) or 0)
        if cap > 0:
            return cap
    except Exception:
        pass
    return 64 * 1024 * 1024


def prepare_classifier(weight, bias, *, weight_dtype=jnp.bfloat16):
    """One-time weight/bias preparation (do this OUTSIDE the per-step call).

    weight: (num_classes, input_dim)   -- nn.Linear layout
    bias:   (num_classes,)

    Casts the weight (bf16 default), transposes it once to (K, N) so the kernel
    issues a plain transposed-free MXU matmul, and zero-pads K/N to lane
    multiples.  Costs one pass over the weight, once, instead of per call.
    """
    N, K = weight.shape
    K_pad = _round_up(K, _LANE)
    N_pad = _round_up(N, _LANE)
    w = jnp.asarray(weight).astype(weight_dtype).T                    # (K, N)
    if (K_pad, N_pad) != (K, N):
        w = jnp.pad(w, ((0, K_pad - K), (0, N_pad - N)))
    b = jnp.asarray(bias).astype(jnp.float32).reshape(1, N)
    if N_pad != N:
        b = jnp.pad(b, ((0, 0), (0, N_pad - N)))
    return {"w_kn": w, "bias_row": b, "num_classes": N, "input_dim": K}


def _linear_kernel_single_k(x_ref, w_ref, b_ref, o_ref):
    xv = x_ref[...]
    if xv.dtype != w_ref.dtype:
        xv = xv.astype(w_ref.dtype)
    acc = jnp.dot(xv, w_ref[...], preferred_element_type=jnp.float32)
    o_ref[...] = (acc + b_ref[...]).astype(o_ref.dtype)


def _linear_kernel_multi_k(x_ref, w_ref, b_ref, o_ref, acc_ref):
    # All program_id / num_programs reads stay OUTSIDE the pl.when bodies.
    k = pl.program_id(2)
    is_first = k == 0
    is_last = k == pl.num_programs(2) - 1

    @pl.when(is_first)
    def _():
        acc_ref[...] = jnp.zeros_like(acc_ref)

    xv = x_ref[...]
    if xv.dtype != w_ref.dtype:
        xv = xv.astype(w_ref.dtype)
    acc_ref[...] += jnp.dot(xv, w_ref[...], preferred_element_type=jnp.float32)

    @pl.when(is_last)
    def _():
        o_ref[...] = (acc_ref[...] + b_ref[...]).astype(o_ref.dtype)


def classifier_apply(params, x, *, tk=None, tm_cap=None):
    """y = x.reshape(-1, input_dim) @ W.T + b, with W/b from prepare_classifier."""
    w_kn, b_row = params["w_kn"], params["bias_row"]
    N, K = params["num_classes"], params["input_dim"]
    K_pad, N_pad = w_kn.shape

    out_dtype = x.dtype
    x2d = x.reshape(-1, K)                      # torch .view(-1, input_dim)
    M = x2d.shape[0]

    x_bytes = x2d.dtype.itemsize
    w_bytes = w_kn.dtype.itemsize
    o_bytes = jnp.dtype(out_dtype).itemsize

    # ---------------- VMEM budget ----------------
    cap = _vmem_capacity_bytes()
    budget = min(int(cap * 0.70), 96 * 1024 * 1024)      # tile-plan budget w/ headroom

    # ---------------- tile plan ----------------
    # M: cover with a single tile when possible so the weight is streamed once.
    tm_cap = 512 if tm_cap is None else max(_SUBLANE, _round_up(tm_cap, _SUBLANE))
    M_pad = _round_up(M, _SUBLANE)
    if M_pad <= tm_cap:
        tm = M_pad
    else:
        tm = tm_cap
        M_pad = _round_up(M, tm)

    # N: lane-minimal padding; tn = largest <=512 multiple of 128 dividing N_pad.
    tn = _LANE
    for t in range(min(512, N_pad), _LANE - 1, -_LANE):
        if N_pad % t == 0:
            tn = t
            break

    # K: single tile if it fits the VMEM budget, else the largest fitting divisor.
    fixed = 2 * tm * tn * o_bytes + 2 * tn * 4 + tm * tn * 4     # out dbuf + bias + acc
    per_k = 2 * (tm * x_bytes + tn * w_bytes)                     # x + w, double-buffered
    if tk is None:
        tk = ((budget - fixed) // per_k) // _LANE * _LANE
    else:
        tk = _round_up(tk, _LANE)
    tk = max(_LANE, min(tk, K_pad))
    while K_pad % tk != 0:
        tk -= _LANE
    single_k = tk == K_pad

    gm, gn, gk = M_pad // tm, N_pad // tn, K_pad // tk
    # v7x megacore: ensure the leading "parallel" axis has >=2 blocks when possible.
    m_leading = (gn == 1 and gm > 1)

    # ---------------- host-side prep (activations only) ----------------
    xk = x2d
    if (M_pad, K_pad) != (M, K):
        xk = jnp.pad(xk, ((0, M_pad - M), (0, K_pad - K)))

    # ---------------- grid / specs ----------------
    if single_k:
        if m_leading:
            grid = (gm, gn)
            x_map = lambda i, j: (i, 0)
            w_map = lambda i, j: (0, j)
            b_map = lambda i, j: (0, j)
            o_map = lambda i, j: (i, j)
        else:
            grid = (gn, gm)
            x_map = lambda j, i: (i, 0)
            w_map = lambda j, i: (0, j)
            b_map = lambda j, i: (0, j)
            o_map = lambda j, i: (i, j)
        kernel = _linear_kernel_single_k
        scratch = []
        semantics = ("parallel", "parallel")
    else:
        if m_leading:
            grid = (gm, gn, gk)
            x_map = lambda i, j, k: (i, k)
            w_map = lambda i, j, k: (k, j)
            b_map = lambda i, j, k: (0, j)
            o_map = lambda i, j, k: (i, j)
        else:
            grid = (gn, gm, gk)
            x_map = lambda j, i, k: (i, k)
            w_map = lambda j, i, k: (k, j)
            b_map = lambda j, i, k: (0, j)
            o_map = lambda j, i, k: (i, j)
        kernel = _linear_kernel_multi_k
        scratch = [pltpu.VMEM((tm, tn), jnp.float32)]
        semantics = ("parallel", "parallel", "arbitrary")

    in_specs = [
        pl.BlockSpec((tm, tk), x_map),      # activations (M, K)
        pl.BlockSpec((tk, tn), w_map),      # weight, prepared (K, N)
        pl.BlockSpec((1, tn), b_map),       # bias tile (re-DMA'd only when j changes)
    ]
    out_spec = pl.BlockSpec((tm, tn), o_map)

    est = (2 * (tm * tk * x_bytes + tk * tn * w_bytes)
           + 2 * tm * tn * o_bytes + 2 * tn * 4
           + (0 if single_k else tm * tn * 4))
    vmem_limit = int(min(cap - 8 * 1024 * 1024,
                         max(32 * 1024 * 1024, est + 8 * 1024 * 1024)))

    out = pl.pallas_call(
        kernel,
        out_shape=jax.ShapeDtypeStruct((M_pad, N_pad), out_dtype),
        grid_spec=pltpu.PrefetchScalarGridSpec(
            num_scalar_prefetch=0,
            grid=grid,
            in_specs=in_specs,
            out_specs=out_spec,
            scratch_shapes=scratch,
        ),
        compiler_params=pltpu.CompilerParams(
            dimension_semantics=semantics,
            vmem_limit_bytes=vmem_limit,
        ),
    )(xk, w_kn, b_row)

    if (M_pad, N_pad) != (M, N):
        out = out[:M, :N]   # TODO(synk): masked stores could avoid this pass for large M
    return out


def classifier_forward(x, weight, bias, *, weight_dtype=None, tk=None, tm_cap=None):
    """One-shot convenience wrapper (prepares the weight per call).

    For repeated use, call prepare_classifier() once (bf16 default = fast path)
    and reuse the result with classifier_apply().  weight_dtype=None keeps the
    weight's own dtype (exact f32 semantics of the PyTorch module).
    """
    wd = weight.dtype if weight_dtype is None else weight_dtype
    params = prepare_classifier(weight, bias, weight_dtype=wd)
    return classifier_apply(params, x, tk=tk, tm_cap=tm_cap)


if __name__ == "__main__":
    key = jax.random.PRNGKey(0)

    def make_linear(k, input_dim, num_classes):
        kw, kb = jax.random.split(k)
        bound = 1.0 / (input_dim ** 0.5)
        w = jax.random.uniform(kw, (num_classes, input_dim), jnp.float32, -bound, bound)
        b = jax.random.uniform(kb, (num_classes,), jnp.float32, -bound, bound)
        return w, b

    k1, k2, k3, k4 = jax.random.split(key, 4)

    # --- test 1: aligned shapes, f32 weights, single-K fast path ---
    D, C, B = 256, 256, 8
    w, b = make_linear(k1, D, C)
    x = jax.random.normal(k2, (B, D), jnp.float32)
    y = jax.block_until_ready(classifier_forward(x, w, b))
    y_ref = x @ w.T + b
    assert y.shape == (B, C)
    assert jnp.allclose(y, y_ref, atol=1e-4, rtol=1e-4)

    # --- test 2: uneven shapes (padding path) + view(-1, D) on a 3-D input ---
    D2, C2 = 200, 136
    w2, b2 = make_linear(k3, D2, C2)
    x2 = jax.random.normal(k4, (2, 3, D2), jnp.float32)     # flattens to M=6
    y2 = jax.block_until_ready(classifier_forward(x2, w2, b2))
    y2_ref = x2.reshape(-1, D2) @ w2.T + b2
    assert y2.shape == (6, C2)
    assert jnp.allclose(y2, y2_ref, atol=1e-4, rtol=1e-4)

    # --- test 3: forced multi-K accumulator path (previously the crashing path) ---
    y3 = jax.block_until_ready(classifier_forward(x, w, b, tk=128))
    assert jnp.allclose(y3, y_ref, atol=1e-4, rtol=1e-4)

    # --- test 4: prepared bf16 weights (production fast path), params reused ---
    params_bf16 = prepare_classifier(w, b)                   # bf16 by default
    y4 = jax.block_until_ready(classifier_apply(params_bf16, x))
    wb = w.astype(jnp.bfloat16).astype(jnp.float32)
    xb = x.astype(jnp.bfloat16).astype(jnp.float32)
    y4_ref = jnp.dot(xb, wb.T, precision=lax.Precision.HIGHEST) + b
    assert y4.shape == (B, C)
    assert jnp.allclose(y4, y4_ref, atol=2e-2, rtol=2e-2)

    # --- test 5: M-leading grid reorder (gn == 1, gm > 1), single-K ---
    x5 = jax.random.normal(k2, (32, D), jnp.float32)
    y5 = jax.block_until_ready(classifier_forward(x5, w, b, tm_cap=8))
    y5_ref = x5 @ w.T + b
    assert jnp.allclose(y5, y5_ref, atol=1e-4, rtol=1e-4)

    # --- test 6: M-leading grid reorder + multi-K accumulator path ---
    y6 = jax.block_until_ready(classifier_forward(x5, w, b, tm_cap=8, tk=128))
    assert jnp.allclose(y6, y5_ref, atol=1e-4, rtol=1e-4)

    print("KERNEL_OK")
</pallas_src>

<mosaic_0001>
module attributes {stable_mosaic.version = 11 : i64} {
  func.func @_linear_kernel_single_k(%arg0: i32, %arg1: i32, %arg2: memref<8x256xf32, #tpu.memory_space<vmem>>, %arg3: memref<256x256xf32, #tpu.memory_space<vmem>>, %arg4: memref<1x256xf32, #tpu.memory_space<vmem>>, %arg5: memref<8x256xf32, #tpu.memory_space<vmem>>) attributes {dimension_semantics = [#tpu.dimension_semantics<parallel>, #tpu.dimension_semantics<parallel>], iteration_bounds = array<i64: 1, 1>, scalar_prefetch = 0 : i64, scratch_operands = 0 : i64, tpu.core_type = #tpu.core_type<tc>, window_params = [{transform_indices = @transform_0, window_bounds = array<i64: 8, 256>}, {transform_indices = @transform_1, window_bounds = array<i64: 256, 256>}, {transform_indices = @transform_2, window_bounds = array<i64: 1, 256>}, {transform_indices = @transform_3, window_bounds = array<i64: 8, 256>}]} {
    %c0 = arith.constant 0 : index
    %c0_0 = arith.constant 0 : index
    %0 = vector.load %arg2[%c0, %c0_0] : memref<8x256xf32, #tpu.memory_space<vmem>>, vector<8x256xf32>
    %c0_1 = arith.constant 0 : index
    %c0_2 = arith.constant 0 : index
    %1 = vector.load %arg3[%c0_1, %c0_2] : memref<256x256xf32, #tpu.memory_space<vmem>>, vector<256x256xf32>
    %cst = arith.constant dense<0.000000e+00> : vector<8x256xf32>
    %2 = tpu.matmul %0, %1, %cst {dimension_numbers = #tpu.dot_dimension_numbers<[1], [0], [0], [1], [0, 0, 1, 1], [], []>} : vector<8x256xf32>, vector<256x256xf32>, vector<8x256xf32> -> vector<8x256xf32>
    %c0_3 = arith.constant 0 : index
    %c0_4 = arith.constant 0 : index
    %3 = vector.load %arg4[%c0_3, %c0_4] : memref<1x256xf32, #tpu.memory_space<vmem>>, vector<1x256xf32>
    %4 = vector.broadcast %3 : vector<1x256xf32> to vector<8x256xf32>
    %5 = arith.addf %2, %4 : vector<8x256xf32>
    %c0_5 = arith.constant 0 : index
    %c0_6 = arith.constant 0 : index
    %6 = vector.load %arg5[%c0_5, %c0_6] : memref<8x256xf32, #tpu.memory_space<vmem>>, vector<8x256xf32>
    tpu.vector_store %arg5[%c0_5, %c0_6], %5 {strides = array<i32>} : memref<8x256xf32, #tpu.memory_space<vmem>>, vector<8x256xf32>,
    return
  }
  func.func @transform_0(%arg0: i32, %arg1: i32) -> (i32, i32) {
    %c0_i32 = arith.constant 0 : i32
    %c0_i32_0 = arith.constant 0 : i32
    return %arg1, %c0_i32 : i32, i32
  }
  func.func @transform_1(%arg0: i32, %arg1: i32) -> (i32, i32) {
    %c0_i32 = arith.constant 0 : i32
    %c0_i32_0 = arith.constant 0 : i32
    return %c0_i32, %arg0 : i32, i32
  }
  func.func @transform_2(%arg0: i32, %arg1: i32) -> (i32, i32) {
    %c0_i32 = arith.constant 0 : i32
    %c0_i32_0 = arith.constant 0 : i32
    return %c0_i32, %arg0 : i32, i32
  }
  func.func @transform_3(%arg0: i32, %arg1: i32) -> (i32, i32) {
    %c0_i32 = arith.constant 0 : i32
    return %arg1, %arg0 : i32, i32
  }
}

</mosaic_0001>

<llo_original>
// kernel: tpu_custom_call.1
$region0: #{tpu_custom_call.1}
  #allocation0 [shape = 'u32[]', space=smem, size = 0x4, offset = 0x4, fixed_abs, tag = 'smem constant byte address 0x4 - core index']
  #allocation1 [shape = 'u32[144,128]{1,0:T(1,128)}', space=vmem, size = 0x12000, scoped, tag = 'internal scratch']
  %s0 = inlined_call_operand.hbm [shape: f32[8,256], index: 0, kind: input, shape index: {}]
  %s1 = inlined_call_operand.hbm [shape: f32[256,256], index: 1, kind: input, shape index: {}]
  %s2 = inlined_call_operand.vmem [shape: f32[1,256], index: 2, kind: input, shape index: {}]
  %s3 = inlined_call_operand.hbm [shape: f32[8,256], index: 3, kind: output, shape index: {}]
  %s4 = sld [smem:[#allocation0]]
  $region30: #{tpu_custom_call.1} parent=0
    _
  %s6 = ssub.s32 1, %s4
  %s7 = scalar_select 0, %s6, %s4
  $region1: #{tpu_custom_call.1} parent=0
    #allocation2 [shape = 'u8[8192]{0}', space=vmem, size = 0x2000, scoped, tag = 'input window, operand 0, single buffered']
    #allocation3 [shape = 's32[1]{0}', space=sflag, size = 0x4, scoped, tag = 'scoped memory for tpu_custom_call.1']
    #allocation4 [shape = 's32[1]{0}', space=sflag, size = 0x4, scoped, tag = 'scoped memory for tpu_custom_call.1']
    #allocation5 [shape = 'u8[262144]{0}', space=vmem, size = 0x40000, scoped, tag = 'input window, operand 1, single buffered']
    #allocation6 [shape = 's32[1]{0}', space=sflag, size = 0x4, scoped, tag = 'scoped memory for tpu_custom_call.1']
    #allocation7 [shape = 'u8[8192]{0}', space=vmem, size = 0x2000, scoped, tag = 'output window, operand 0, single buffered']
    %8 = vsyncpa [#allocation3], 0
    %9 = vsyncpa [#allocation6], 0
    %10 = vsyncpa [#allocation4], 0
    // Predicated region
    $region2: #{tpu_custom_call.1} parent=1 // pred_check
      _
    $region3: #{tpu_custom_call.1} parent=1 // pred_check_branch
      %12 = sbr.rel (0) target = $region5
    $region4: #{tpu_custom_call.1} parent=1 // pred_region
      %s14 = ssub.s32 256, 256
      %15 = vsyncadd [#allocation3], %s14
      %s17 = sshll.u32 [#allocation2], 4
      %s18 = int_to_ptr.vmem [resolvable:$true] %s17
      %20 = dma.hbm_to_vmem [thread:$0]  %s0, 256, %s18, [#allocation3]
    $region5: #{tpu_custom_call.1} parent=1 // pred_fallthru
      _
    // Predicated region
    $region6: #{tpu_custom_call.1} parent=1 // pred_check
      _
    $region7: #{tpu_custom_call.1} parent=1 // pred_check_branch
      %22 = sbr.rel (0) target = $region9
    $region8: #{tpu_custom_call.1} parent=1 // pred_region
      %s24 = ssub.s32 8192, 8192
      %25 = vsyncadd [#allocation6], %s24
      %s26 = sshll.u32 [#allocation5], 4
      %s27 = int_to_ptr.vmem [resolvable:$true] %s26
      %32 = dma.hbm_to_vmem [thread:$0]  %s1, 8192, %s27, [#allocation6], 256, 256, 16
    $region9: #{tpu_custom_call.1} parent=1 // pred_fallthru
      _
    // Predicated region
    $region10: #{tpu_custom_call.1} parent=1 // pred_check
      _
    $region11: #{tpu_custom_call.1} parent=1 // pred_check_branch
      %34 = sbr.rel (0) target = $region13
    $region12: #{tpu_custom_call.1} parent=1 // pred_region
      _
    $region13: #{tpu_custom_call.1} parent=1 // pred_fallthru
      _
    // Predicated region
    $region14: #{tpu_custom_call.1} parent=1 // pred_check
      _
    $region15: #{tpu_custom_call.1} parent=1 // pred_check_branch
      %36 = sbr.rel (0) target = $region17
    $region16: #{tpu_custom_call.1} parent=1 // pred_region
      %37 = dma.done [#allocation3], 256
    $region17: #{tpu_custom_call.1} parent=1 // pred_fallthru
      _
    // Predicated region
    $region18: #{tpu_custom_call.1} parent=1 // pred_check
      _
    $region19: #{tpu_custom_call.1} parent=1 // pred_check_branch
      %39 = sbr.rel (0) target = $region21
    $region20: #{tpu_custom_call.1} parent=1 // pred_region
      %40 = dma.done [#allocation6], 8192
    $region21: #{tpu_custom_call.1} parent=1 // pred_fallthru
      _
    %v41 = vld [vmem:[#allocation2] sm:$0xff]
    %v42 = vld [vmem:[#allocation2 + $0x8] sm:$0xff]
    %v43 = vld [vmem:[#allocation5] sm:$0xff]
    %v44 = vld [vmem:[#allocation5 + $0x8] sm:$0xff]
    %v45 = vld [vmem:[#allocation5 + $0x10] sm:$0xff]
    %v46 = vld [vmem:[#allocation5 + $0x18] sm:$0xff]
    %v47 = vld [vmem:[#allocation5 + $0x20] sm:$0xff]
    %v48 = vld [vmem:[#allocation5 + $0x28] sm:$0xff]
    %v49 = vld [vmem:[#allocation5 + $0x30] sm:$0xff]
    %v50 = vld [vmem:[#allocation5 + $0x38] sm:$0xff]
    %v51 = vld [vmem:[#allocation5 + $0x40] sm:$0xff]
    %v52 = vld [vmem:[#allocation5 + $0x48] sm:$0xff]
    %v53 = vld [vmem:[#allocation5 + $0x50] sm:$0xff]
    %v54 = vld [vmem:[#allocation5 + $0x58] sm:$0xff]
    %v55 = vld [vmem:[#allocation5 + $0x60] sm:$0xff]
    %v56 = vld [vmem:[#allocation5 + $0x68] sm:$0xff]
    %v57 = vld [vmem:[#allocation5 + $0x70] sm:$0xff]
    %v58 = vld [vmem:[#allocation5 + $0x78] sm:$0xff]
    %v59 = vld [vmem:[#allocation5 + $0x80] sm:$0xff]
    %v60 = vld [vmem:[#allocation5 + $0x88] sm:$0xff]
    %v61 = vld [vmem:[#allocation5 + $0x90] sm:$0xff]
    %v62 = vld [vmem:[#allocation5 + $0x98] sm:$0xff]
    %v63 = vld [vmem:[#allocation5 + $0xa0] sm:$0xff]
    %v64 = vld [vmem:[#allocation5 + $0xa8] sm:$0xff]
    %v65 = vld [vmem:[#allocation5 + $0xb0] sm:$0xff]
    %v66 = vld [vmem:[#allocation5 + $0xb8] sm:$0xff]
    %v67 = vld [vmem:[#allocation5 + $0xc0] sm:$0xff]
    %v68 = vld [vmem:[#allocation5 + $0xc8] sm:$0xff]
    %v69 = vld [vmem:[#allocation5 + $0xd0] sm:$0xff]
    %v70 = vld [vmem:[#allocation5 + $0xd8] sm:$0xff]
    %v71 = vld [vmem:[#allocation5 + $0xe0] sm:$0xff]
    %v72 = vld [vmem:[#allocation5 + $0xe8] sm:$0xff]
    %v73 = vld [vmem:[#allocation5 + $0xf0] sm:$0xff]
    %v74 = vld [vmem:[#allocation5 + $0xf8] sm:$0xff]
    %v75 = vld [vmem:[#allocation5 + $0x100] sm:$0xff]
    %v76 = vld [vmem:[#allocation5 + $0x108] sm:$0xff]
    %v77 = vld [vmem:[#allocation5 + $0x110] sm:$0xff]
    %v78 = vld [vmem:[#allocation5 + $0x118] sm:$0xff]
    %v79 = vld [vmem:[#allocation5 + $0x120] sm:$0xff]
    %v80 = vld [vmem:[#allocation5 + $0x128] sm:$0xff]
    %v81 = vld [vmem:[#allocation5 + $0x130] sm:$0xff]
    %v82 = vld [vmem:[#allocation5 + $0x138] sm:$0xff]
    %v83 = vld [vmem:[#allocation5 + $0x140] sm:$0xff]
    %v84 = vld [vmem:[#allocation5 + $0x148] sm:$0xff]
    %v85 = vld [vmem:[#allocation5 + $0x150] sm:$0xff]
    %v86 = vld [vmem:[#allocation5 + $0x158] sm:$0xff]
    %v87 = vld [vmem:[#allocation5 + $0x160] sm:$0xff]
    %v88 = vld [vmem:[#allocation5 + $0x168] sm:$0xff]
    %v89 = vld [vmem:[#allocation5 + $0x170] sm:$0xff]
    %v90 = vld [vmem:[#allocation5 + $0x178] sm:$0xff]
    %v91 = vld [vmem:[#allocation5 + $0x180] sm:$0xff]
    %v92 = vld [vmem:[#allocation5 + $0x188] sm:$0xff]
    %v93 = vld [vmem:[#allocation5 + $0x190] sm:$0xff]
    %v94 = vld [vmem:[#allocation5 + $0x198] sm:$0xff]
    %v95 = vld [vmem:[#allocation5 + $0x1a0] sm:$0xff]
    %v96 = vld [vmem:[#allocation5 + $0x1a8] sm:$0xff]
    %v97 = vld [vmem:[#allocation5 + $0x1b0] sm:$0xff]
    %v98 = vld [vmem:[#allocation5 + $0x1b8] sm:$0xff]
    %v99 = vld [vmem:[#allocation5 + $0x1c0] sm:$0xff]
    %v100 = vld [vmem:[#allocation5 + $0x1c8] sm:$0xff]
    %v101 = vld [vmem:[#allocation5 + $0x1d0] sm:$0xff]
    %v102 = vld [vmem:[#allocation5 + $0x1d8] sm:$0xff]
    %v103 = vld [vmem:[#allocation5 + $0x1e0] sm:$0xff]
    %v104 = vld [vmem:[#allocation5 + $0x1e8] sm:$0xff]
    %v105 = vld [vmem:[#allocation5 + $0x1f0] sm:$0xff]
    %v106 = vld [vmem:[#allocation5 + $0x1f8] sm:$0xff]
    %v107 = vld [vmem:[%s2] sm:$0x3]
    %v109 = vlaneseq
    %v110 = vshrl.u32 %v109, 7
    %v111 = vsub.s32 0, %v110
    %v112 = vrot.slane %v107, %v111
    %v113 = vlaneseq
    %v114 = vshrl.u32 %v113, 7
    %v115 = vsub.s32 1, %v114
    %v116 = vrot.slane %v107, %v115
    %119 = vmatprep.subr.mxu0 %v44
    %120 = vmatpush1.msra.mxu0 %v43
    %121 = vmatprep.subr.mxu0 %v46
    %122 = vmatpush1.msra.mxu0 %v45
    %123 = vmatprep.subr.mxu0 %v48
    %124 = vmatpush1.msra.mxu0 %v47
    %125 = vmatprep.subr.mxu0 %v50
    %126 = vmatpush1.msra.mxu0 %v49
    %127 = vmatprep.subr.mxu0 %v52
    %128 = vmatpush1.msra.mxu0 %v51
    %129 = vmatprep.subr.mxu0 %v54
    %130 = vmatpush1.msra.mxu0 %v53
    %131 = vmatprep.subr.mxu0 %v56
    %132 = vmatpush1.msra.mxu0 %v55
    %133 = vmatprep.subr.mxu0 %v58
    %134 = vmatpush1.msra.mxu0 %v57
    %135 = vmatprep.subr.mxu0 %v60
    %136 = vmatpush1.msra.mxu0 %v59
    %137 = vmatprep.subr.mxu0 %v62
    %138 = vmatpush1.msra.mxu0 %v61
    %139 = vmatprep.subr.mxu0 %v64
    %140 = vmatpush1.msra.mxu0 %v63
    %141 = vmatprep.subr.mxu0 %v66
    %142 = vmatpush1.msra.mxu0 %v65
    %143 = vmatprep.subr.mxu0 %v68
    %144 = vmatpush1.msra.mxu0 %v67
    %145 = vmatprep.subr.mxu0 %v70
    %146 = vmatpush1.msra.mxu0 %v69
    %147 = vmatprep.subr.mxu0 %v72
    %148 = vmatpush1.msra.mxu0 %v71
    %149 = vmatprep.subr.mxu0 %v74
    %150 = vmatpush1.msra.mxu0 %v73
    %151 = vmatprep.subr.mxu0 %v76
    %152 = vmatpush1.msra.mxu0 %v75
    %153 = vmatprep.subr.mxu0 %v78
    %154 = vmatpush1.msra.mxu0 %v77
    %155 = vmatprep.subr.mxu0 %v80
    %156 = vmatpush1.msra.mxu0 %v79
    %157 = vmatprep.subr.mxu0 %v82
    %158 = vmatpush1.msra.mxu0 %v81
    %159 = vmatprep.subr.mxu0 %v84
    %160 = vmatpush1.msra.mxu0 %v83
    %161 = vmatprep.subr.mxu0 %v86
    %162 = vmatpush1.msra.mxu0 %v85
    %163 = vmatprep.subr.mxu0 %v88
    %164 = vmatpush1.msra.mxu0 %v87
    %165 = vmatprep.subr.mxu0 %v90
    %166 = vmatpush1.msra.mxu0 %v89
    %167 = vmatprep.subr.mxu0 %v92
    %168 = vmatpush1.msra.mxu0 %v91
    %169 = vmatprep.subr.mxu0 %v94
    %170 = vmatpush1.msra.mxu0 %v93
    %171 = vmatprep.subr.mxu0 %v96
    %172 = vmatpush1.msra.mxu0 %v95
    %173 = vmatprep.subr.mxu0 %v98
    %174 = vmatpush1.msra.mxu0 %v97
    %175 = vmatprep.subr.mxu0 %v100
    %176 = vmatpush1.msra.mxu0 %v99
    %177 = vmatprep.subr.mxu0 %v102
    %178 = vmatpush1.msra.mxu0 %v101
    %179 = vmatprep.subr.mxu0 %v104
    %180 = vmatpush1.msra.mxu0 %v103
    %181 = vmatprep.subr.mxu0 %v106
    %182 = vmatpush1.msra.mxu0 %v105
    %183 = vmatprep.mubr.f32.mxu0 %v42
    %184 = vmatmul.mubr.f32.gmra.mrb[0].mxu0 %v41
    %v185 = vpop.f32.mrb[0].mxu0
    %v186 = vadd.f32 %v112, %v185
    %v187 = vpop.f32.mrb[0].mxu0
    %v188 = vadd.f32 %v116, %v187
    %189 = vdwg.mxu0
    %190 = vst [vmem:[#allocation7] sm:$0xff] %v186
    %191 = vst [vmem:[#allocation7 + $0x8] sm:$0xff] %v188
    // Predicated region
    $region22: #{tpu_custom_call.1} parent=1 // pred_check
      _
    $region23: #{tpu_custom_call.1} parent=1 // pred_check_branch
      %193 = sbr.rel (0) target = $region25
    $region24: #{tpu_custom_call.1} parent=1 // pred_region
      %s195 = ssub.s32 256, 256
      %196 = vsyncadd [#allocation4], %s195
      %s198 = sshll.u32 [#allocation7], 4
      %s199 = int_to_ptr.vmem [resolvable:$true] %s198
      %201 = dma.vmem_to_hbm [thread:$0]  %s199, 256, %s3, [#allocation4]
    $region25: #{tpu_custom_call.1} parent=1 // pred_fallthru
      _
    // Predicated region
    $region26: #{tpu_custom_call.1} parent=1 // pred_check
      _
    $region27: #{tpu_custom_call.1} parent=1 // pred_check_branch
      %203 = sbr.rel (0) target = $region29
    $region28: #{tpu_custom_call.1} parent=1 // pred_region
      %204 = dma.done [#allocation4], 256
    $region29: #{tpu_custom_call.1} parent=1 // pred_fallthru
      _
    %205 = vsyncpa [#allocation3], 1
    %206 = vsyncpa [#allocation6], 1
    %207 = vsyncpa [#allocation4], 1

</llo_original>
